<compile_context>
chip_gen: v5e
topology: v5e:2x2
jax: 0.10.0
libtpu: 0.0.40
codegen_flags: <defaults>
</compile_context>

<pallas_src>
import math

import jax
import jax.numpy as jnp
from jax.experimental import pallas as pl
from jax.experimental.pallas import tpu as pltpu

M_MARGIN = 4  # self.m in the PyTorch module (phiflag=True path)

# Thresholds for k = floor(4 * acos(c) / pi): k = #{j in 1..4 : c <= cos(j*pi/4)}.
_K_THRESHOLDS = tuple(math.cos(j * math.pi / 4.0) for j in range(1, M_MARGIN + 1))


def _angle_linear_kernel(x_ref, w_ref, xlen_ref, inv_wnorm_ref, cos_ref, phi_ref):
    # MXU matmul with f32 accumulation (operands may be bf16 or f32).
    raw = jnp.dot(x_ref[...], w_ref[...], preferred_element_type=jnp.float32)  # (TB, TN)

    xlen = xlen_ref[...]                               # (TB, 1) f32, hoisted to wrapper
    inv_xlen = pl.reciprocal(xlen, approx=False)       # exact: feeds cos_theta directly
    inv_wnorm = inv_wnorm_ref[...]                     # (1, TN) f32, hoisted to wrapper

    # cos_theta = (x @ w) * (1/||w_col||) * (1/||x_row||), clamped to [-1, 1].
    # (wlen == 1 after normalization, so the /wlen of the reference is a no-op.)
    ct = raw * inv_wnorm * inv_xlen
    ct = jnp.clip(ct, -1.0, 1.0)

    # cos(4*theta) = 8 c^4 - 8 c^2 + 1
    c2 = ct * ct
    cos_m_theta = 8.0 * c2 * c2 - 8.0 * c2 + 1.0

    # k = floor(4*theta/pi) without arccos: count thresholds crossed (pure VPU compares).
    k = ((ct <= _K_THRESHOLDS[0]).astype(jnp.float32)
         + (ct <= _K_THRESHOLDS[1]).astype(jnp.float32)
         + (ct <= _K_THRESHOLDS[2]).astype(jnp.float32)
         + (ct <= _K_THRESHOLDS[3]).astype(jnp.float32))
    sign = 1.0 - 2.0 * jnp.mod(k, 2.0)                 # (-1)^k for integer-valued k
    phi_theta = sign * cos_m_theta - 2.0 * k

    cos_ref[...] = (ct * xlen).astype(cos_ref.dtype)
    phi_ref[...] = (phi_theta * xlen).astype(phi_ref.dtype)


def _pick_tile(total, preferred, align):
    """Largest multiple of `align` dividing `total` that is <= preferred, else `total`."""
    if total <= preferred:
        return total
    t = (preferred // align) * align
    while t >= align:
        if total % t == 0:
            return t
        t -= align
    return total


def angle_linear(x, w, *, tile_b=None, tile_n=None, mxu_dtype=jnp.bfloat16):
    """x: (B, in_features), w: (in_features, out_features).

    Returns (cos_theta, phi_theta), each (B, out_features) float32, matching the
    PyTorch AngleLinear.forward output (phiflag=True, m=4).

    mxu_dtype: dtype of the matmul operands (bfloat16 recommended on v6e/v7x;
    jnp.float32 for bit-faithful numerics). Norms are always computed in f32.
    Tiling: tile_b multiple of 8 (>=128/256 keeps the MXU fed), tile_n multiple of
    128 (lane-dense stores). Defaults (<=256, <=1024) fit the v5e 16 MiB default
    scoped VMEM for D=512-class models and leave headroom on v7x's 64 MiB.
    """
    B, D = x.shape
    Dw, N = w.shape
    assert D == Dw

    if tile_b is None:
        tile_b = _pick_tile(B, 256, 8)
    if tile_n is None:
        tile_n = _pick_tile(N, 1024, 128)
    assert B % tile_b == 0 and N % tile_n == 0

    x32 = x.astype(jnp.float32)
    w32 = w.astype(jnp.float32)
    # Hoisted once (cheap XLA ops): per-column 1/||w_col|| (== the renorm/mul of the
    # PyTorch module) and per-row ||x_i||. rsqrt -> single EUP-style op, no sqrt+divide.
    inv_wnorm = jax.lax.rsqrt(jnp.sum(w32 * w32, axis=0, keepdims=True))   # (1, N)
    xlen = jnp.sqrt(jnp.sum(x32 * x32, axis=1, keepdims=True))             # (B, 1)

    x_mxu = x.astype(mxu_dtype)
    w_mxu = w.astype(mxu_dtype)

    grid = (N // tile_n, B // tile_b)   # N outer: each weight tile loaded from HBM once
    out_shapes = (
        jax.ShapeDtypeStruct((B, N), jnp.float32),
        jax.ShapeDtypeStruct((B, N), jnp.float32),
    )
    return pl.pallas_call(
        _angle_linear_kernel,
        out_shape=out_shapes,
        grid_spec=pltpu.PrefetchScalarGridSpec(
            num_scalar_prefetch=0,
            grid=grid,
            in_specs=[
                pl.BlockSpec((tile_b, D), lambda j, i: (i, 0)),     # x batch tile
                pl.BlockSpec((D, tile_n), lambda j, i: (0, j)),     # weight tile (resident over i)
                pl.BlockSpec((tile_b, 1), lambda j, i: (i, 0)),     # ||x_row||
                pl.BlockSpec((1, tile_n), lambda j, i: (0, j)),     # 1/||w_col||
            ],
            out_specs=[
                pl.BlockSpec((tile_b, tile_n), lambda j, i: (i, j)),
                pl.BlockSpec((tile_b, tile_n), lambda j, i: (i, j)),
            ],
        ),
        compiler_params=pltpu.CompilerParams(
            dimension_semantics=("parallel", "parallel"),
        ),
    )(x_mxu, w_mxu, xlen, inv_wnorm)


def angle_linear_ref(x, w):
    """Pure-JAX reference mirroring the PyTorch forward exactly (acos/floor path)."""
    ww = w / jnp.sqrt(jnp.sum(w ** 2, axis=0, keepdims=True))
    xlen = jnp.sqrt(jnp.sum(x ** 2, axis=1, keepdims=True))
    wlen = jnp.sqrt(jnp.sum(ww ** 2, axis=0, keepdims=True))
    ct = (x @ ww) / xlen / wlen
    ct = jnp.clip(ct, -1.0, 1.0)
    cos_m_theta = 8.0 * ct ** 4 - 8.0 * ct ** 2 + 1.0
    theta = jnp.arccos(ct)
    k = jnp.floor(M_MARGIN * theta / 3.14159265)
    phi = (-1.0) ** k * cos_m_theta - 2.0 * k
    return ct * xlen, phi * xlen


if __name__ == "__main__":
    key = jax.random.PRNGKey(0)
    kx, kw = jax.random.split(key)

    B, in_features, out_features = 16, 32, 256

    x = jax.random.normal(kx, (B, in_features), dtype=jnp.float32)
    w = jax.random.uniform(kw, (in_features, out_features),
                           dtype=jnp.float32, minval=-1.0, maxval=1.0)

    cos_ref, phi_ref = angle_linear_ref(x, w)
    xlen = jnp.sqrt(jnp.sum(x ** 2, axis=1, keepdims=True))
    ct_ref = jnp.clip(cos_ref / xlen, -1.0, 1.0)
    # Elements within a few ulps of a k-threshold (cos(j*pi/4)) may legitimately pick the
    # neighbouring k in the compare-based kernel vs. the acos/floor reference chain.
    thr = jnp.asarray(_K_THRESHOLDS, dtype=jnp.float32)
    near_boundary = jnp.min(jnp.abs(ct_ref[..., None] - thr), axis=-1) < 1e-5

    # 1) Bit-faithful path (f32 MXU operands), explicit tiles -> multi-step (2,2) grid.
    cos_f32, phi_f32 = angle_linear(x, w, tile_b=8, tile_n=128, mxu_dtype=jnp.float32)
    jax.block_until_ready((cos_f32, phi_f32))
    assert jnp.allclose(cos_f32, cos_ref, atol=1e-4, rtol=1e-4), "cos_theta mismatch (f32)"
    phi_ok = jnp.isclose(phi_f32, phi_ref, atol=1e-4, rtol=1e-4) | near_boundary
    assert bool(jnp.all(phi_ok)), "phi_theta mismatch (f32)"

    # 2) Default fast path (bf16 MXU operands, auto tiles): loose numerical check.
    cos_bf16, phi_bf16 = angle_linear(x, w)
    jax.block_until_ready((cos_bf16, phi_bf16))
    assert jnp.allclose(cos_bf16, cos_ref, atol=1e-1, rtol=5e-2), "cos_theta mismatch (bf16)"
    assert bool(jnp.all(jnp.isfinite(phi_bf16))), "phi_theta not finite (bf16)"

    print("KERNEL_OK")
</pallas_src>

<mosaic_0001>
module attributes {stable_mosaic.version = 11 : i64} {
  func.func @_angle_linear_kernel(%arg0: i32, %arg1: i32, %arg2: memref<8x32xf32, #tpu.memory_space<vmem>>, %arg3: memref<32x128xf32, #tpu.memory_space<vmem>>, %arg4: memref<8x1xf32, #tpu.memory_space<vmem>>, %arg5: memref<1x128xf32, #tpu.memory_space<vmem>>, %arg6: memref<8x128xf32, #tpu.memory_space<vmem>>, %arg7: memref<8x128xf32, #tpu.memory_space<vmem>>) attributes {dimension_semantics = [#tpu.dimension_semantics<parallel>, #tpu.dimension_semantics<parallel>], iteration_bounds = array<i64: 2, 2>, scalar_prefetch = 0 : i64, scratch_operands = 0 : i64, tpu.core_type = #tpu.core_type<tc>, window_params = [{transform_indices = @transform_0, window_bounds = array<i64: 8, 32>}, {transform_indices = @transform_1, window_bounds = array<i64: 32, 128>}, {transform_indices = @transform_2, window_bounds = array<i64: 8, 1>}, {transform_indices = @transform_3, window_bounds = array<i64: 1, 128>}, {transform_indices = @transform_4, window_bounds = array<i64: 8, 128>}, {transform_indices = @transform_5, window_bounds = array<i64: 8, 128>}]} {
    %c0 = arith.constant 0 : index
    %c0_0 = arith.constant 0 : index
    %0 = vector.load %arg2[%c0, %c0_0] : memref<8x32xf32, #tpu.memory_space<vmem>>, vector<8x32xf32>
    %c0_1 = arith.constant 0 : index
    %c0_2 = arith.constant 0 : index
    %1 = vector.load %arg3[%c0_1, %c0_2] : memref<32x128xf32, #tpu.memory_space<vmem>>, vector<32x128xf32>
    %cst = arith.constant dense<0.000000e+00> : vector<8x128xf32>
    %2 = tpu.matmul %0, %1, %cst {dimension_numbers = #tpu.dot_dimension_numbers<[1], [0], [0], [1], [0, 0, 1, 1], [], []>} : vector<8x32xf32>, vector<32x128xf32>, vector<8x128xf32> -> vector<8x128xf32>
    %c0_3 = arith.constant 0 : index
    %c0_4 = arith.constant 0 : index
    %3 = vector.load %arg4[%c0_3, %c0_4] : memref<8x1xf32, #tpu.memory_space<vmem>>, vector<8x1xf32>
    %4 = tpu.reciprocal %3 : vector<8x1xf32> -> vector<8x1xf32>
    %c0_5 = arith.constant 0 : index
    %c0_6 = arith.constant 0 : index
    %5 = vector.load %arg5[%c0_5, %c0_6] : memref<1x128xf32, #tpu.memory_space<vmem>>, vector<1x128xf32>
    %6 = vector.broadcast %5 : vector<1x128xf32> to vector<8x128xf32>
    %7 = arith.mulf %2, %6 : vector<8x128xf32>
    %8 = vector.broadcast %4 : vector<8x1xf32> to vector<8x128xf32>
    %9 = arith.mulf %7, %8 : vector<8x128xf32>
    %cst_7 = arith.constant -1.000000e+00 : f32
    %cst_8 = arith.constant 1.000000e+00 : f32
    %10 = vector.broadcast %cst_7 : f32 to vector<8x128xf32>
    %11 = arith.maximumf %10, %9 : vector<8x128xf32>
    %12 = vector.broadcast %cst_8 : f32 to vector<8x128xf32>
    %13 = arith.minimumf %12, %11 : vector<8x128xf32>
    %14 = arith.mulf %13, %13 : vector<8x128xf32>
    %cst_9 = arith.constant 8.000000e+00 : f32
    %15 = vector.broadcast %cst_9 : f32 to vector<8x128xf32>
    %16 = arith.mulf %15, %14 : vector<8x128xf32>
    %17 = arith.mulf %16, %14 : vector<8x128xf32>
    %cst_10 = arith.constant 8.000000e+00 : f32
    %18 = vector.broadcast %cst_10 : f32 to vector<8x128xf32>
    %19 = arith.mulf %18, %14 : vector<8x128xf32>
    %20 = arith.subf %17, %19 : vector<8x128xf32>
    %cst_11 = arith.constant 1.000000e+00 : f32
    %21 = vector.broadcast %cst_11 : f32 to vector<8x128xf32>
    %22 = arith.addf %20, %21 : vector<8x128xf32>
    %cst_12 = arith.constant 0.707106769 : f32
    %23 = vector.broadcast %cst_12 : f32 to vector<8x128xf32>
    %24 = arith.cmpf ole, %13, %23 : vector<8x128xf32>
    %25 = arith.extui %24 : vector<8x128xi1> to vector<8x128xi32>
    %26 = arith.sitofp %25 : vector<8x128xi32> to vector<8x128xf32>
    %cst_13 = arith.constant 6.12323426E-17 : f32
    %27 = vector.broadcast %cst_13 : f32 to vector<8x128xf32>
    %28 = arith.cmpf ole, %13, %27 : vector<8x128xf32>
    %29 = arith.extui %28 : vector<8x128xi1> to vector<8x128xi32>
    %30 = arith.sitofp %29 : vector<8x128xi32> to vector<8x128xf32>
    %31 = arith.addf %26, %30 : vector<8x128xf32>
    %cst_14 = arith.constant -0.707106769 : f32
    %32 = vector.broadcast %cst_14 : f32 to vector<8x128xf32>
    %33 = arith.cmpf ole, %13, %32 : vector<8x128xf32>
    %34 = arith.extui %33 : vector<8x128xi1> to vector<8x128xi32>
    %35 = arith.sitofp %34 : vector<8x128xi32> to vector<8x128xf32>
    %36 = arith.addf %31, %35 : vector<8x128xf32>
    %cst_15 = arith.constant -1.000000e+00 : f32
    %37 = vector.broadcast %cst_15 : f32 to vector<8x128xf32>
    %38 = arith.cmpf ole, %13, %37 : vector<8x128xf32>
    %39 = arith.extui %38 : vector<8x128xi1> to vector<8x128xi32>
    %40 = arith.sitofp %39 : vector<8x128xi32> to vector<8x128xf32>
    %41 = arith.addf %36, %40 : vector<8x128xf32>
    %cst_16 = arith.constant 2.000000e+00 : f32
    %42 = vector.broadcast %cst_16 : f32 to vector<8x128xf32>
    %43 = arith.remf %41, %42 : vector<8x128xf32>
    %cst_17 = arith.constant 0.000000e+00 : f32
    %44 = vector.broadcast %cst_17 : f32 to vector<8x128xf32>
    %45 = arith.cmpf one, %43, %44 : vector<8x128xf32>
    %cst_18 = arith.constant 0.000000e+00 : f32
    %46 = vector.broadcast %cst_18 : f32 to vector<8x128xf32>
    %47 = arith.cmpf olt, %43, %46 : vector<8x128xf32>
    %cst_19 = arith.constant 0.000000e+00 : f32
    %48 = arith.cmpf olt, %cst_16, %cst_19 : f32
    %49 = vector.broadcast %48 : i1 to vector<8x128xi1>
    %50 = vector.broadcast %49 : vector<8x128xi1> to vector<8x128xi1>
    %51 = arith.xori %47, %50 : vector<8x128xi1>
    %52 = arith.andi %51, %45 : vector<8x128xi1>
    %53 = vector.broadcast %cst_16 : f32 to vector<8x128xf32>
    %54 = arith.addf %43, %53 : vector<8x128xf32>
    %55 = arith.select %52, %54, %43 : vector<8x128xi1>, vector<8x128xf32>
    %cst_20 = arith.constant 2.000000e+00 : f32
    %56 = vector.broadcast %cst_20 : f32 to vector<8x128xf32>
    %57 = arith.mulf %56, %55 : vector<8x128xf32>
    %cst_21 = arith.constant 1.000000e+00 : f32
    %58 = vector.broadcast %cst_21 : f32 to vector<8x128xf32>
    %59 = arith.subf %58, %57 : vector<8x128xf32>
    %60 = arith.mulf %59, %22 : vector<8x128xf32>
    %cst_22 = arith.constant 2.000000e+00 : f32
    %61 = vector.broadcast %cst_22 : f32 to vector<8x128xf32>
    %62 = arith.mulf %61, %41 : vector<8x128xf32>
    %63 = arith.subf %60, %62 : vector<8x128xf32>
    %64 = vector.broadcast %3 : vector<8x1xf32> to vector<8x128xf32>
    %65 = arith.mulf %13, %64 : vector<8x128xf32>
    %c0_23 = arith.constant 0 : index
    %c0_24 = arith.constant 0 : index
    %66 = vector.load %arg6[%c0_23, %c0_24] : memref<8x128xf32, #tpu.memory_space<vmem>>, vector<8x128xf32>
    tpu.vector_store %arg6[%c0_23, %c0_24], %65 {strides = array<i32>} : memref<8x128xf32, #tpu.memory_space<vmem>>, vector<8x128xf32>,
    %67 = vector.broadcast %3 : vector<8x1xf32> to vector<8x128xf32>
    %68 = arith.mulf %63, %67 : vector<8x128xf32>
    %c0_25 = arith.constant 0 : index
    %c0_26 = arith.constant 0 : index
    %69 = vector.load %arg7[%c0_25, %c0_26] : memref<8x128xf32, #tpu.memory_space<vmem>>, vector<8x128xf32>
    tpu.vector_store %arg7[%c0_25, %c0_26], %68 {strides = array<i32>} : memref<8x128xf32, #tpu.memory_space<vmem>>, vector<8x128xf32>,
    return
  }
  func.func @transform_0(%arg0: i32, %arg1: i32) -> (i32, i32) {
    %c0_i32 = arith.constant 0 : i32
    %c0_i32_0 = arith.constant 0 : i32
    return %arg1, %c0_i32 : i32, i32
  }
  func.func @transform_1(%arg0: i32, %arg1: i32) -> (i32, i32) {
    %c0_i32 = arith.constant 0 : i32
    %c0_i32_0 = arith.constant 0 : i32
    return %c0_i32, %arg0 : i32, i32
  }
  func.func @transform_2(%arg0: i32, %arg1: i32) -> (i32, i32) {
    %c0_i32 = arith.constant 0 : i32
    %c0_i32_0 = arith.constant 0 : i32
    return %arg1, %c0_i32 : i32, i32
  }
  func.func @transform_3(%arg0: i32, %arg1: i32) -> (i32, i32) {
    %c0_i32 = arith.constant 0 : i32
    %c0_i32_0 = arith.constant 0 : i32
    return %c0_i32, %arg0 : i32, i32
  }
  func.func @transform_4(%arg0: i32, %arg1: i32) -> (i32, i32) {
    %c0_i32 = arith.constant 0 : i32
    return %arg1, %arg0 : i32, i32
  }
  func.func @transform_5(%arg0: i32, %arg1: i32) -> (i32, i32) {
    %c0_i32 = arith.constant 0 : i32
    return %arg1, %arg0 : i32, i32
  }
}

</mosaic_0001>

<llo_original>
// kernel: tpu_custom_call.1
$region0: #{tpu_custom_call.1}
  #allocation0 [shape = 'u32[]', space=smem, size = 0x4, offset = 0x4, fixed_abs, tag = 'smem constant byte address 0x4 - core index']
  #allocation1 [shape = 'u32[72,128]{1,0:T(1,128)}', space=vmem, size = 0x9000, scoped, tag = 'internal scratch']
  %s0 = inlined_call_operand.vmem [shape: f32[16,32], index: 0, kind: input, shape index: {}]
  %s1 = inlined_call_operand.hbm [shape: f32[32,256], index: 1, kind: input, shape index: {}]
  %s2 = inlined_call_operand.vmem [shape: f32[16,1], index: 2, kind: input, shape index: {}]
  %s3 = inlined_call_operand.hbm [shape: f32[1,256], index: 3, kind: input, shape index: {}]
  %s4 = inlined_call_operand.hbm [shape: f32[16,256], index: 4, kind: output, shape index: {0}]
  %s5 = inlined_call_operand.hbm [shape: f32[16,256], index: 5, kind: output, shape index: {1}]
  %6 = xla_tuple %s4, %s5
  %s7 = sld [smem:[#allocation0]]
  $region65: #{tpu_custom_call.1} parent=0
    _
  %s9 = ssub.s32 1, %s7
  %s10 = scalar_select 0, %s9, %s7
  $region1: #{tpu_custom_call.1} parent=0
    #allocation2 [shape = 'u8[32768]{0}', space=vmem, size = 0x8000, scoped, tag = 'input window, operand 1']
    #allocation3 [shape = 's32[2]{0}', space=sflag, size = 0x8, scoped, tag = 'scoped memory for tpu_custom_call.1']
    #allocation4 [shape = 's32[2]{0}', space=sflag, size = 0x8, scoped, tag = 'scoped memory for tpu_custom_call.1']
    #allocation5 [shape = 'u8[1024]{0}', space=vmem, size = 0x400, scoped, tag = 'input window, operand 3']
    #allocation6 [shape = 's32[2]{0}', space=sflag, size = 0x8, scoped, tag = 'scoped memory for tpu_custom_call.1']
    #allocation7 [shape = 'u8[8192]{0}', space=vmem, size = 0x2000, scoped, tag = 'output window, operand 0']
    #allocation8 [shape = 'u8[8192]{0}', space=vmem, size = 0x2000, scoped, tag = 'output window, operand 1']
    #allocation9 [shape = 's32[2]{0}', space=sflag, size = 0x8, scoped, tag = 'scoped memory for tpu_custom_call.1']
    %11 = vsyncpa [#allocation3], 0
    %s12 = scalar_lea.sflag [#allocation3], 1
    %13 = vsyncpa %s12, 0
    %14 = vsyncpa [#allocation6], 0
    %s15 = scalar_lea.sflag [#allocation6], 1
    %16 = vsyncpa %s15, 0
    %17 = vsyncpa [#allocation4], 0
    %s18 = scalar_lea.sflag [#allocation4], 1
    %19 = vsyncpa %s18, 0
    %20 = vsyncpa [#allocation9], 0
    %s21 = scalar_lea.sflag [#allocation9], 1
    %22 = vsyncpa %s21, 0
    loop: start=0, step=1, limit=6
    $region2: #{tpu_custom_call.1} parent=1 // loop_pre_header
      _
    $region3: #{tpu_custom_call.1} parent=1 // loop_header
      %s24 = sphi 0, %s28
      %p25 = scmp.ge.s32.totalorder %s24, 6
      %s31 = sphi 0, %s43
      %s32 = sphi 0, %s39
      %s33 = sphi 0, %s31
      %s34 = sphi 0, %s32
      %s35 = sphi 0, %s33
      %s36 = sphi 0, %s34
      %s46 = sphi 0, %s48
      %s49 = sphi 0, %s46
      %s50 = sphi 0, %s49
      %s66 = sphi 0, %s50
      %s72 = sphi 0, %s74
      %s75 = sphi 0, %s72
      %s76 = sphi 0, %s75
      %s92 = sphi 0, %s76
      %s98 = sphi 0, %s100
      %s101 = sphi 0, %s98
      %s102 = sphi 0, %s101
      %s118 = sphi 0, %s102
      %s124 = sphi 0, %s126
      %s127 = sphi 0, %s124
      %s128 = sphi 0, %s127
      %s144 = sphi 0, %s128
      %s152 = sphi 0, %s154
      %s155 = sphi 0, %s152
      %s156 = sphi 0, %s155
      %s172 = sphi 0, %s156
      %s180 = sphi 0, %s182
      %s183 = sphi 0, %s180
      %s184 = sphi 0, %s183
      %s200 = sphi 0, %s184
    $region4: #{tpu_custom_call.1} parent=1 // loop_header_branch
      %27 = sbr.rel (%p25) target = $region8
    $region5: #{tpu_custom_call.1} parent=1 // loop_body
      %s29 = ssub.s32 %s24, 1
      %s30 = ssub.s32 %s24, 2
      %s37 = sadd.s32 1, %s32
      %p38 = scmp.ge.s32.totalorder %s37, 2
      %s39 = scalar_select %p38, 0, %s37
      %s40 = sadd.s32 1, %s31
      %s41 = scalar_select %p38, %s40, %s31
      %p42 = scmp.ge.s32.totalorder %s41, 2
      %s43 = scalar_select %p42, 0, %s41
      %s44 = ssub.s32 %s32, %s39
      %p45 = scmp.eq.s32.totalorder %s44, 0
      %s47 = sadd.s32 %s46, 1
      %s48 = scalar_select %p45, %s46, %s47
      %p51 = pneg %p45
      %p52 = scmp.eq.s32.totalorder %s24, 3
      %p53 = por %p51, %p52
      %p54 = scmp.ne.s32.totalorder %s46, %s49
      %p55 = scmp.eq.s32.totalorder %s24, 0
      %p56 = por %p54, %p55
      %p57 = scmp.ne.s32.totalorder %s46, %s49
      %p58 = scmp.eq.s32.totalorder %s29, 3
      %p59 = por %p57, %p58
      %p60 = scmp.ne.s32.totalorder %s49, %s50
      %p61 = scmp.eq.s32.totalorder %s29, 0
      %p62 = por %p60, %p61
      %p63 = scmp.ne.s32.totalorder %s49, %s50
      %p64 = scmp.eq.s32.totalorder %s30, 3
      %p65 = por %p63, %p64
      %p67 = scmp.ne.s32.totalorder %s50, %s66
      %p68 = scmp.eq.s32.totalorder %s30, 0
      %p69 = por %p67, %p68
      %s70 = ssub.s32 %s31, %s43
      %p71 = scmp.eq.s32.totalorder %s70, 0
      %s73 = sadd.s32 %s72, 1
      %s74 = scalar_select %p71, %s72, %s73
      %p77 = pneg %p71
      %p78 = scmp.eq.s32.totalorder %s24, 3
      %p79 = por %p77, %p78
      %p80 = scmp.ne.s32.totalorder %s72, %s75
      %p81 = scmp.eq.s32.totalorder %s24, 0
      %p82 = por %p80, %p81
      %p83 = scmp.ne.s32.totalorder %s72, %s75
      %p84 = scmp.eq.s32.totalorder %s29, 3
      %p85 = por %p83, %p84
      %p86 = scmp.ne.s32.totalorder %s75, %s76
      %p87 = scmp.eq.s32.totalorder %s29, 0
      %p88 = por %p86, %p87
      %p89 = scmp.ne.s32.totalorder %s75, %s76
      %p90 = scmp.eq.s32.totalorder %s30, 3
      %p91 = por %p89, %p90
      %p93 = scmp.ne.s32.totalorder %s76, %s92
      %p94 = scmp.eq.s32.totalorder %s30, 0
      %p95 = por %p93, %p94
      %s96 = ssub.s32 %s32, %s39
      %p97 = scmp.eq.s32.totalorder %s96, 0
      %s99 = sadd.s32 %s98, 1
      %s100 = scalar_select %p97, %s98, %s99
      %p103 = pneg %p97
      %p104 = scmp.eq.s32.totalorder %s24, 3
      %p105 = por %p103, %p104
      %p106 = scmp.ne.s32.totalorder %s98, %s101
      %p107 = scmp.eq.s32.totalorder %s24, 0
      %p108 = por %p106, %p107
      %p109 = scmp.ne.s32.totalorder %s98, %s101
      %p110 = scmp.eq.s32.totalorder %s29, 3
      %p111 = por %p109, %p110
      %p112 = scmp.ne.s32.totalorder %s101, %s102
      %p113 = scmp.eq.s32.totalorder %s29, 0
      %p114 = por %p112, %p113
      %p115 = scmp.ne.s32.totalorder %s101, %s102
      %p116 = scmp.eq.s32.totalorder %s30, 3
      %p117 = por %p115, %p116
      %p119 = scmp.ne.s32.totalorder %s102, %s118
      %p120 = scmp.eq.s32.totalorder %s30, 0
      %p121 = por %p119, %p120
      %s122 = ssub.s32 %s31, %s43
      %p123 = scmp.eq.s32.totalorder %s122, 0
      %s125 = sadd.s32 %s124, 1
      %s126 = scalar_select %p123, %s124, %s125
      %p129 = pneg %p123
      %p130 = scmp.eq.s32.totalorder %s24, 3
      %p131 = por %p129, %p130
      %p132 = scmp.ne.s32.totalorder %s124, %s127
      %p133 = scmp.eq.s32.totalorder %s24, 0
      %p134 = por %p132, %p133
      %p135 = scmp.ne.s32.totalorder %s124, %s127
      %p136 = scmp.eq.s32.totalorder %s29, 3
      %p137 = por %p135, %p136
      %p138 = scmp.ne.s32.totalorder %s127, %s128
      %p139 = scmp.eq.s32.totalorder %s29, 0
      %p140 = por %p138, %p139
      %p141 = scmp.ne.s32.totalorder %s127, %s128
      %p142 = scmp.eq.s32.totalorder %s30, 3
      %p143 = por %p141, %p142
      %p145 = scmp.ne.s32.totalorder %s128, %s144
      %p146 = scmp.eq.s32.totalorder %s30, 0
      %p147 = por %p145, %p146
      %s148 = ssub.s32 %s32, %s39
      %s149 = ssub.s32 %s31, %s43
      %s150 = sor.u32 %s148, %s149
      %p151 = scmp.eq.s32.totalorder %s150, 0
      %s153 = sadd.s32 %s152, 1
      %s154 = scalar_select %p151, %s152, %s153
      %p157 = pneg %p151
      %p158 = scmp.eq.s32.totalorder %s24, 3
      %p159 = por %p157, %p158
      %p160 = scmp.ne.s32.totalorder %s152, %s155
      %p161 = scmp.eq.s32.totalorder %s24, 0
      %p162 = por %p160, %p161
      %p163 = scmp.ne.s32.totalorder %s152, %s155
      %p164 = scmp.eq.s32.totalorder %s29, 3
      %p165 = por %p163, %p164
      %p166 = scmp.ne.s32.totalorder %s155, %s156
      %p167 = scmp.eq.s32.totalorder %s29, 0
      %p168 = por %p166, %p167
      %p169 = scmp.ne.s32.totalorder %s155, %s156
      %p170 = scmp.eq.s32.totalorder %s30, 3
      %p171 = por %p169, %p170
      %p173 = scmp.ne.s32.totalorder %s156, %s172
      %p174 = scmp.eq.s32.totalorder %s30, 0
      %p175 = por %p173, %p174
      %s176 = ssub.s32 %s32, %s39
      %s177 = ssub.s32 %s31, %s43
      %s178 = sor.u32 %s176, %s177
      %p179 = scmp.eq.s32.totalorder %s178, 0
      %s181 = sadd.s32 %s180, 1
      %s182 = scalar_select %p179, %s180, %s181
      %p185 = pneg %p179
      %p186 = scmp.eq.s32.totalorder %s24, 3
      %p187 = por %p185, %p186
      %p188 = scmp.ne.s32.totalorder %s180, %s183
      %p189 = scmp.eq.s32.totalorder %s24, 0
      %p190 = por %p188, %p189
      %p191 = scmp.ne.s32.totalorder %s180, %s183
      %p192 = scmp.eq.s32.totalorder %s29, 3
      %p193 = por %p191, %p192
      %p194 = scmp.ne.s32.totalorder %s183, %s184
      %p195 = scmp.eq.s32.totalorder %s29, 0
      %p196 = por %p194, %p195
      %p197 = scmp.ne.s32.totalorder %s183, %s184
      %p198 = scmp.eq.s32.totalorder %s30, 3
      %p199 = por %p197, %p198
      %p201 = scmp.ne.s32.totalorder %s184, %s200
      %p202 = scmp.eq.s32.totalorder %s30, 0
      %p203 = por %p201, %p202
      %p204 = scmp.le.s32.totalorder 1, %s24
      %p205 = scmp.lt.s32.totalorder %s24, 5
      %p206 = pnand %p204, %p205
      %p207 = pneg %p206
      // Predicated region
      $region9: #{tpu_custom_call.1} parent=5 // pred_check
        _
      $region10: #{tpu_custom_call.1} parent=5 // pred_check_branch
        %209 = sbr.rel (%p206) target = $region12
      $region11: #{tpu_custom_call.1} parent=5 // pred_region
        %s210 = ssub.s32 %s24, 1
      $region12: #{tpu_custom_call.1} parent=5 // pred_fallthru
        _
      %p211 = scmp.lt.s32.totalorder %s24, 4
      // Predicated region
      $region13: #{tpu_custom_call.1} parent=5 // pred_check
        %p212 = pneg %p211
      $region14: #{tpu_custom_call.1} parent=5 // pred_check_branch
        %214 = sbr.rel (%p212) target = $region16
      $region15: #{tpu_custom_call.1} parent=5 // pred_region
        // Predicated region
        $region17: #{tpu_custom_call.1} parent=15 // pred_check
          %p215 = pneg %p56
        $region18: #{tpu_custom_call.1} parent=15 // pred_check_branch
          %217 = sbr.rel (%p215) target = $region20
        $region19: #{tpu_custom_call.1} parent=15 // pred_region
          %p218 = scmp.lt.s32.totalorder %s32, 1
          %s219 = scalar_select %p218, %s32, 1
          %s220 = smul.addr %s219, 8
          %s221 = scalar_lea.vmem %s0, %s220
        $region20: #{tpu_custom_call.1} parent=15 // pred_fallthru
          _
        // Predicated region
        $region21: #{tpu_custom_call.1} parent=15 // pred_check
          %p222 = pneg %p82
        $region22: #{tpu_custom_call.1} parent=15 // pred_check_branch
          %224 = sbr.rel (%p222) target = $region24
        $region23: #{tpu_custom_call.1} parent=15 // pred_region
          %s225 = sand.u32 %s72, 1
          %s226 = scalar_lea.sflag [#allocation3], %s225
          %s227 = sand.u32 %s72, 1
          %s228 = smul.addr %s227, 32
          %s229 = scalar_lea.vmem [#allocation2], %s228
          %231 = vsyncadd %s226, 0
          %s232 = smul.addr %s31, 8
          %s233 = scalar_lea.hbm %s1, %s232
          %s234 = sshll.u32 %s233, 4
          %s235 = int_to_ptr.hbm [resolvable:$true] %s234
          %s236 = sshll.u32 %s229, 4
          %s237 = int_to_ptr.vmem [resolvable:$true] %s236
          %242 = dma.hbm_to_vmem [thread:$0]  %s235, 512, %s237, %s226, 256, 128, 8
        $region24: #{tpu_custom_call.1} parent=15 // pred_fallthru
          _
        // Predicated region
        $region25: #{tpu_custom_call.1} parent=15 // pred_check
          %p243 = pneg %p108
        $region26: #{tpu_custom_call.1} parent=15 // pred_check_branch
          %245 = sbr.rel (%p243) target = $region28
        $region27: #{tpu_custom_call.1} parent=15 // pred_region
          %p246 = scmp.lt.s32.totalorder %s32, 1
          %s247 = scalar_select %p246, %s32, 1
          %s248 = smul.addr %s247, 8
          %s249 = scalar_lea.vmem %s2, %s248
        $region28: #{tpu_custom_call.1} parent=15 // pred_fallthru
          _
        // Predicated region
        $region29: #{tpu_custom_call.1} parent=15 // pred_check
          %p250 = pneg %p134
        $region30: #{tpu_custom_call.1} parent=15 // pred_check_branch
          %252 = sbr.rel (%p250) target = $region32
        $region31: #{tpu_custom_call.1} parent=15 // pred_region
          %s253 = sand.u32 %s124, 1
          %s254 = scalar_lea.sflag [#allocation6], %s253
          %s255 = sand.u32 %s124, 1
          %s256 = scalar_lea.vmem [#allocation5], %s255
          %258 = vsyncadd %s254, 0
          %s259 = scalar_lea.hbm %s3, %s31
          %s261 = sshll.u32 %s259, 4
          %s262 = int_to_ptr.hbm [resolvable:$true] %s261
          %s263 = sshll.u32 %s256, 4
          %s264 = int_to_ptr.vmem [resolvable:$true] %s263
          %266 = dma.hbm_to_vmem [thread:$0]  %s262, 16, %s264, %s254
        $region32: #{tpu_custom_call.1} parent=15 // pred_fallthru
          _
      $region16: #{tpu_custom_call.1} parent=5 // pred_fallthru
        _
      %p267 = scmp.le.s32.totalorder 1, %s24
      %p268 = scmp.lt.s32.totalorder %s24, 5
      %p269 = pnand %p267, %p268
      %p270 = pneg %p269
      // Predicated region
      $region33: #{tpu_custom_call.1} parent=5 // pred_check
        _
      $region34: #{tpu_custom_call.1} parent=5 // pred_check_branch
        %272 = sbr.rel (%p269) target = $region36
      $region35: #{tpu_custom_call.1} parent=5 // pred_region
        %s273 = ssub.s32 %s24, 1
        %s274 = sand.u32 %s75, 1
        %s275 = scalar_lea.sflag [#allocation3], %s274
        %s276 = sand.u32 %s75, 1
        %s277 = smul.addr %s276, 32
        %s278 = scalar_lea.vmem [#allocation2], %s277
        // Predicated region
        $region37: #{tpu_custom_call.1} parent=35 // pred_check
          %p279 = pneg %p88
        $region38: #{tpu_custom_call.1} parent=35 // pred_check_branch
          %281 = sbr.rel (%p279) target = $region40
        $region39: #{tpu_custom_call.1} parent=35 // pred_region
          %283 = dma.done %s275, 512
        $region40: #{tpu_custom_call.1} parent=35 // pred_fallthru
          _
        %s284 = sand.u32 %s127, 1
        %s285 = scalar_lea.sflag [#allocation6], %s284
        %s286 = sand.u32 %s127, 1
        %s287 = scalar_lea.vmem [#allocation5], %s286
        // Predicated region
        $region41: #{tpu_custom_call.1} parent=35 // pred_check
          %p288 = pneg %p140
        $region42: #{tpu_custom_call.1} parent=35 // pred_check_branch
          %290 = sbr.rel (%p288) target = $region44
        $region43: #{tpu_custom_call.1} parent=35 // pred_region
          %292 = dma.done %s285, 16
        $region44: #{tpu_custom_call.1} parent=35 // pred_fallthru
          _
        %p293 = scmp.lt.s32.totalorder %s34, 1
        %s294 = scalar_select %p293, %s34, 1
        %s295 = smul.addr %s294, 8
        %s296 = scalar_lea.vmem %s0, %s295
        %p297 = pneg %p62
        %p298 = pneg %p59
        %s299 = sand.u32 %s75, 1
        %s300 = scalar_lea.sflag [#allocation3], %s299
        %s301 = sand.u32 %s75, 1
        %s302 = smul.addr %s301, 32
        %s303 = scalar_lea.vmem [#allocation2], %s302
        %p304 = pneg %p88
        %p305 = pneg %p85
        %p306 = scmp.lt.s32.totalorder %s34, 1
        %s307 = scalar_select %p306, %s34, 1
        %s308 = smul.addr %s307, 8
        %s309 = scalar_lea.vmem %s2, %s308
        %p310 = pneg %p114
        %p311 = pneg %p111
        %s312 = sand.u32 %s127, 1
        %s313 = scalar_lea.sflag [#allocation6], %s312
        %s314 = sand.u32 %s127, 1
        %s315 = scalar_lea.vmem [#allocation5], %s314
        %p316 = pneg %p140
        %p317 = pneg %p137
        %p318 = pneg %p168
        %p319 = pneg %p165
        %s320 = sand.u32 %s155, 1
        %s321 = scalar_lea.sflag [#allocation4], %s320
        %s322 = sand.u32 %s155, 1
        %s323 = smul.addr %s322, 8
        %s324 = scalar_lea.vmem [#allocation7], %s323
        %p325 = pneg %p196
        %p326 = pneg %p193
        %s327 = sand.u32 %s183, 1
        %s328 = scalar_lea.sflag [#allocation9], %s327
        %s329 = sand.u32 %s183, 1
        %s330 = smul.addr %s329, 8
        %s331 = scalar_lea.vmem [#allocation8], %s330
        %p332 = scmp.lt.s32.totalorder %s34, 1
        %s333 = scalar_select %p332, %s34, 1
        %s334 = smul.addr %s333, 8
        %s335 = scalar_lea.vmem %s0, %s334
        %p336 = scmp.lt.s32.totalorder %s34, 1
        %s337 = scalar_select %p336, %s34, 1
        %s338 = smul.addr %s337, 8
        %s339 = scalar_lea.vmem %s2, %s338
        %v340 = vld [vmem:[%s335] sm:$0xff]
        %v341 = vld [vmem:[%s278] sm:$0xff]
        %v342 = vld [vmem:[%s278 + $0x8] sm:$0xff]
        %v343 = vld [vmem:[%s278 + $0x10] sm:$0xff]
        %v344 = vld [vmem:[%s278 + $0x18] sm:$0xff]
        %vm345 = vcmask 261120
        %v347 = vsel %vm345, %v340, 0
        %349 = vmatpush.msra.mxu0 0.0
        %350 = vmatpush.msra.mxu0 0.0
        %351 = vmatpush.msra.mxu0 0.0
        %352 = vmatpush.msra.mxu0 0.0
        %353 = vmatpush.msra.mxu0 0.0
        %354 = vmatpush.msra.mxu0 0.0
        %355 = vmatpush.msra.mxu0 0.0
        %356 = vmatpush.msra.mxu0 0.0
        %357 = vmatpush.msra.mxu0 0.0
        %358 = vmatpush.msra.mxu0 0.0
        %359 = vmatpush.msra.mxu0 0.0
        %360 = vmatpush.msra.mxu0 0.0
        %361 = vmatpush.msra.mxu0 %v344
        %362 = vmatpush.msra.mxu0 %v343
        %363 = vmatpush.msra.mxu0 %v342
        %364 = vmatpush.msra.mxu0 %v341
        %365 = vmatmul.f32.gmra.mxu0 %v347
        %v366 = vpop.f32.mrf.mxu0
        %v367 = vadd.f32 0.0, %v366
        %368 = vdwg.mxu0
        %v369 = vld [vmem:[%s339] sm:$0xff]
        %v370 = vrcp.pop %v369
        %v371 = vmul.f32 %v369, %v370
        %v372 = vsub.f32 1.0, %v371
        %v373 = vmul.f32 %v370, %v372
        %v374 = vadd.f32 %v370, %v373
        %vm375 = vweird.f32 %v369
        %vm376 = vweird.f32 %v370
        %vm377 = vmor %vm375, %vm376
        %v378 = vsel %vm377, %v370, %v374
        %v379 = vand.u32 2147483647, %v369
        %vm380 = vcmp.eq.f32.partialorder %v379, 8.507059e+37
        %v381 = vand.u32 %v369, 2147483648
        %v382 = vor.u32 1.1754944e-38, %v381
        %v383 = vsel %vm380, %v382, %v378
        %v384 = vld [vmem:[%s287] sm:$0x1]
        %v386 = vperm.slane %v384, 0
        %v388 = vmul.f32 %v367, %v386
        %390 = vset.pattern.permute.xlu0 0
        %391 = vperm.xlu0 %390, %v383
        %v392 = vpop.permute.xlu0 %391
        %v394 = vmul.f32 %v388, %v392
        %v395 = vmax.f32 %v394, -1.0
        %v396 = vmin.f32 %v395, 1.0
        %v397 = vmul.f32 %v396, %v396
        %v398 = vmul.f32 %v397, 8.0
        %v399 = vmul.f32 %v398, %v397
        %v400 = vsub.f32 %v399, %v398
        %v401 = vadd.f32 %v400, 1.0
        %vm402 = vcmp.le.f32.partialorder %v396, 0.70710677
        %v403 = vsel %vm402, 1, 0
        %v404 = vcvt.s32.f32 %v403
        %vm405 = vcmp.le.f32.partialorder %v396, 6.123234e-17
        %v406 = vsel %vm405, 1, 0
        %v407 = vcvt.s32.f32 %v406
        %v408 = vadd.f32 %v404, %v407
        %vm409 = vcmp.le.f32.partialorder %v396, -0.70710677
        %v410 = vsel %vm409, 1, 0
        %v411 = vcvt.s32.f32 %v410
        %v412 = vadd.f32 %v408, %v411
        %vm413 = vcmp.le.f32.partialorder %v396, -1.0
        %v414 = vsel %vm413, 1, 0
        %v415 = vcvt.s32.f32 %v414
        %v416 = vadd.f32 %v412, %v415
        %v417 = vand.u32 2147483647, %v416
        %v418 = vrcp.pop 2.0
        %v419 = vmul.f32 2.0, %v418
        %v420 = vsub.f32 1.0, %v419
        %v421 = vmul.f32 %v418, %v420
        %v422 = vadd.f32 %v418, %v421
        %vm423 = vweird.f32 %v418
        %v424 = vsel %vm423, %v418, %v422
        %v425 = vmul.f32 %v417, %v424
        %v426 = vfloor.f32 %v425
        %v427 = vmul.f32 %v426, 2.0
        %v428 = vsub.f32 %v417, %v427
        %vm429 = vcmp.eq.f32.partialorder %v428, 2.0
        %v430 = vsel %vm429, 0.0, %v428
        %v431 = vand.u32 2147483647, %v430
        %v432 = vand.u32 %v416, 2147483648
        %v433 = vor.u32 %v431, %v432
        %vm434 = vcmp.ne.f32.partialorder %v433, 0.0
        %vm435 = vcmp.lt.f32.partialorder %v433, 0.0
        %vm436 = vmand %vm435, %vm434
        %v437 = vadd.f32 %v433, 2.0
        %v438 = vsel %vm436, %v437, %v433
        %v439 = vmul.f32 %v438, 2.0
        %v440 = vsub.f32 1.0, %v439
        %v441 = vmul.f32 %v440, %v401
        %v442 = vmul.f32 %v416, 2.0
        %v443 = vsub.f32 %v441, %v442
        %445 = vset.pattern.permute.xlu0 0
        %446 = vperm.xlu0 %445, %v369
        %v447 = vpop.permute.xlu0 %446
        %v449 = vmul.f32 %v396, %v447
        %450 = vst [vmem:[%s324] sm:$0xff] %v449
        %v451 = vmul.f32 %v443, %v447
        %452 = vst [vmem:[%s331] sm:$0xff] %v451
        %s453 = sand.u32 %s155, 1
        %s454 = scalar_lea.sflag [#allocation4], %s453
        %s455 = sand.u32 %s155, 1
        %s456 = smul.addr %s455, 8
        %s457 = scalar_lea.vmem [#allocation7], %s456
        %s458 = sand.u32 %s183, 1
        %s459 = scalar_lea.sflag [#allocation9], %s458
        %s460 = sand.u32 %s183, 1
        %s461 = smul.addr %s460, 8
        %s462 = scalar_lea.vmem [#allocation8], %s461
        // Predicated region
        $region45: #{tpu_custom_call.1} parent=35 // pred_check
          %p463 = pneg %p165
        $region46: #{tpu_custom_call.1} parent=35 // pred_check_branch
          %465 = sbr.rel (%p463) target = $region48
        $region47: #{tpu_custom_call.1} parent=35 // pred_region
          %467 = vsyncadd %s454, 0
          %s468 = smul.addr %s34, 2
          %s469 = sadd.s32 %s33, %s468
          %s470 = smul.addr %s469, 8
          %s471 = scalar_lea.hbm %s4, %s470
          %s473 = sshll.u32 %s457, 4
          %s474 = int_to_ptr.vmem [resolvable:$true] %s473
          %s475 = sshll.u32 %s471, 4
          %s476 = int_to_ptr.hbm [resolvable:$true] %s475
          %478 = dma.vmem_to_hbm [thread:$0]  %s474, 128, %s476, %s454
        $region48: #{tpu_custom_call.1} parent=35 // pred_fallthru
          _
        // Predicated region
        $region49: #{tpu_custom_call.1} parent=35 // pred_check
          %p479 = pneg %p193
        $region50: #{tpu_custom_call.1} parent=35 // pred_check_branch
          %481 = sbr.rel (%p479) target = $region52
        $region51: #{tpu_custom_call.1} parent=35 // pred_region
          %483 = vsyncadd %s459, 0
          %s484 = smul.addr %s34, 2
          %s485 = sadd.s32 %s33, %s484
          %s486 = smul.addr %s485, 8
          %s487 = scalar_lea.hbm %s5, %s486
          %s489 = sshll.u32 %s462, 4
          %s490 = int_to_ptr.vmem [resolvable:$true] %s489
          %s491 = sshll.u32 %s487, 4
          %s492 = int_to_ptr.hbm [resolvable:$true] %s491
          %494 = dma.vmem_to_hbm [thread:$0]  %s490, 128, %s492, %s459
        $region52: #{tpu_custom_call.1} parent=35 // pred_fallthru
          _
      $region36: #{tpu_custom_call.1} parent=5 // pred_fallthru
        _
      %p495 = scmp.le.s32.totalorder 2, %s24
      // Predicated region
      $region53: #{tpu_custom_call.1} parent=5 // pred_check
        %p496 = pneg %p495
      $region54: #{tpu_custom_call.1} parent=5 // pred_check_branch
        %498 = sbr.rel (%p496) target = $region56
      $region55: #{tpu_custom_call.1} parent=5 // pred_region
        %s499 = ssub.s32 %s24, 2
        // Predicated region
        $region57: #{tpu_custom_call.1} parent=55 // pred_check
          %p500 = pneg %p171
        $region58: #{tpu_custom_call.1} parent=55 // pred_check_branch
          %502 = sbr.rel (%p500) target = $region60
        $region59: #{tpu_custom_call.1} parent=55 // pred_region
          %s503 = sand.u32 %s156, 1
          %s504 = scalar_lea.sflag [#allocation4], %s503
          %s505 = sand.u32 %s156, 1
          %s506 = smul.addr %s505, 8
          %s507 = scalar_lea.vmem [#allocation7], %s506
          %509 = dma.done %s504, 128
        $region60: #{tpu_custom_call.1} parent=55 // pred_fallthru
          _
        // Predicated region
        $region61: #{tpu_custom_call.1} parent=55 // pred_check
          %p510 = pneg %p199
        $region62: #{tpu_custom_call.1} parent=55 // pred_check_branch
          %512 = sbr.rel (%p510) target = $region64
        $region63: #{tpu_custom_call.1} parent=55 // pred_region
          %s513 = sand.u32 %s184, 1
          %s514 = scalar_lea.sflag [#allocation9], %s513
          %s515 = sand.u32 %s184, 1
          %s516 = smul.addr %s515, 8
          %s517 = scalar_lea.vmem [#allocation8], %s516
          %519 = dma.done %s514, 128
        $region64: #{tpu_custom_call.1} parent=55 // pred_fallthru
          _
      $region56: #{tpu_custom_call.1} parent=5 // pred_fallthru
        _
    $region6: #{tpu_custom_call.1} parent=1 // loop_footer
      %s28 = sadd.s32 1, %s24
    $region7: #{tpu_custom_call.1} parent=1 // loop_footer_branch
      %23 = sbr.rel target = $region3
    $region8: #{tpu_custom_call.1} parent=1 // loop_exit
      _
    %520 = vsyncpa [#allocation3], 1
    %s521 = scalar_lea.sflag [#allocation3], 1
    %522 = vsyncpa %s521, 1
    %523 = vsyncpa [#allocation6], 1
    %s524 = scalar_lea.sflag [#allocation6], 1
    %525 = vsyncpa %s524, 1
    %526 = vsyncpa [#allocation4], 1
    %s527 = scalar_lea.sflag [#allocation4], 1
    %528 = vsyncpa %s527, 1
    %529 = vsyncpa [#allocation9], 1
    %s530 = scalar_lea.sflag [#allocation9], 1
    %531 = vsyncpa %s530, 1

</llo_original>
